<compile_context>
chip_gen: v7x
topology: tpu7x:2x2x1
jax: 0.10.0
libtpu: 0.0.40
codegen_flags: <defaults>
</compile_context>

<pallas_src>
import functools

import jax
import jax.numpy as jnp
from jax.experimental import pallas as pl
from jax.experimental.pallas import tpu as pltpu

_LANES = 128
_SUBLANES = 8
# Keep double-buffered inputs comfortably inside every chip's default scoped
# VMEM (v5e default 16 MiB, v6e/v7x default 32 MiB, v7x physical 64 MiB).
_VMEM_INPUT_BUDGET = 12 * 1024 * 1024


def _mod_factor(d, gamma):
    """|x - t| ** gamma, avoiding the EUP exp+log path for common gammas."""
    if gamma == 0.25:
        return jnp.sqrt(jnp.sqrt(d))
    if gamma == 0.5:
        return jnp.sqrt(d)
    if gamma == 1.0:
        return d
    if gamma == 1.5:
        return d * jnp.sqrt(d)
    if gamma == 2.0:
        return d * d
    if gamma == 3.0:
        return d * d * d
    return jnp.power(d, jnp.float32(gamma))


def _dscpp_kernel(x_ref, t_ref, out_ref, acc_i, acc_d, *,
                  gamma, valid_rows, need_mask):
    """Grid = (B, NC, K). Each step processes a (1, br, 128) tile of one
    sample's chunk, reduces it to a single (8,128) vreg contribution and
    accumulates in VMEM; the last K step writes the chunk's partial
    (intersection, denominator) sums."""
    c = pl.program_id(1)
    k = pl.program_id(2)
    kpc = pl.num_programs(2)

    @pl.when(k == 0)
    def _():
        acc_i[...] = jnp.zeros_like(acc_i)
        acc_d[...] = jnp.zeros_like(acc_d)

    x = x_ref[...].astype(jnp.float32)      # (1, br, 128)
    t = t_ref[...].astype(jnp.float32)
    br = x.shape[1]

    if need_mask:
        # Tail tiles may contain unspecified data past the array edge (or
        # clamped duplicate tiles when the K split over-covers); zero them.
        row0 = (c * kpc + k) * br
        rows = row0 + jax.lax.broadcasted_iota(jnp.int32, x.shape, 1)
        valid = rows < valid_rows
        x = jnp.where(valid, x, 0.0)
        t = jnp.where(valid, t, 0.0)

    mod = _mod_factor(jnp.abs(x - t), gamma)
    px = mod * x
    # (1, br, 128) -> (br//8, 8, 128) is tile-aligned; summing axis 0 is a
    # pure VPU vreg-add tree (no XLU, no per-element VMEM accumulator store).
    ci = (px * t).reshape(br // _SUBLANES, _SUBLANES, _LANES)
    cd = (mod * (x + t)).reshape(br // _SUBLANES, _SUBLANES, _LANES)
    acc_i[...] += jnp.sum(ci, axis=0)
    acc_d[...] += jnp.sum(cd, axis=0)

    @pl.when(k == kpc - 1)
    def _():
        inter = jnp.sum(acc_i[...])
        denom = jnp.sum(acc_d[...])
        lane = jax.lax.broadcasted_iota(jnp.int32, out_ref.shape, 3)
        # Lane 0 = partial intersection, lane 1 = partial denominator.
        out_ref[...] = jnp.where(lane == 0, inter,
                                 jnp.where(lane == 1, denom, 0.0))


def dsc_plus_plus_loss(inputs, targets, gamma=0.5, smooth=1e-5,
                       block_rows=4096, k_splits=None,
                       cast_targets_bf16=False):
    """JAX/Pallas equivalent of DSCPlusPlusLoss.forward.

    inputs, targets: (B, ...) arrays (e.g. NCHW); flattened per sample.
    cast_targets_bf16: halves target HBM traffic (exact for 0/1 masks).
    Returns a scalar float32 loss.
    """
    B = inputs.shape[0]
    x = inputs.reshape(B, -1)
    t = targets.reshape(B, -1)
    if cast_targets_bf16 and t.dtype != jnp.bfloat16:
        t = t.astype(jnp.bfloat16)
    N = x.shape[1]

    # Lane-dense layout: each sample becomes (rows, 128).  Pad only up to a
    # multiple of 128 lanes (no pad at all when N % 128 == 0 and N >= 1024);
    # zero padding contributes exactly 0 to both sums.
    valid_rows = pl.cdiv(N, _LANES)
    arr_rows = max(valid_rows, _SUBLANES)
    padded_n = arr_rows * _LANES
    if padded_n != N:
        pad = padded_n - N
        x = jnp.pad(x, ((0, 0), (0, pad)))
        t = jnp.pad(t, ((0, 0), (0, pad)))
    x = x.reshape(B, arr_rows, _LANES)
    t = t.reshape(B, arr_rows, _LANES)

    # Tile size: as large as possible within the VMEM input budget.
    per_row_bytes = 2 * _LANES * (x.dtype.itemsize + t.dtype.itemsize)  # 2x buffered
    max_br = max(_SUBLANES,
                 (_VMEM_INPUT_BUDGET // per_row_bytes) // _SUBLANES * _SUBLANES)
    br = max(_SUBLANES, (min(int(block_rows), arr_rows) // _SUBLANES) * _SUBLANES)
    br = min(br, max_br)

    n_tiles = pl.cdiv(arr_rows, br)
    if k_splits is None:
        # Split the K reduction across TensorCores only when the batch axis
        # alone cannot keep both v7x cores busy; harmless on v5e/v6e.
        nc = 2 if (B == 1 and n_tiles >= 2) else 1
    else:
        nc = max(1, int(k_splits))
    nc = min(nc, n_tiles)
    kpc = pl.cdiv(n_tiles, nc)
    need_mask = (nc * kpc * br) != arr_rows

    if nc * kpc == n_tiles:
        in_map = lambda b, c, k: (b, c * kpc + k, 0)
    else:
        last_tile = n_tiles - 1
        in_map = lambda b, c, k: (b, jnp.minimum(c * kpc + k, last_tile), 0)
    out_map = lambda b, c, k: (b, c, 0, 0)

    kernel = functools.partial(_dscpp_kernel, gamma=float(gamma),
                               valid_rows=int(valid_rows),
                               need_mask=bool(need_mask))

    flops = 10 * B * padded_n
    transcendentals = 0 if float(gamma) in (1.0, 2.0, 3.0) else B * padded_n
    bytes_accessed = (x.size * x.dtype.itemsize + t.size * t.dtype.itemsize
                      + B * nc * _SUBLANES * _LANES * 4)

    out = pl.pallas_call(
        kernel,
        out_shape=jax.ShapeDtypeStruct((B, nc, _SUBLANES, _LANES), jnp.float32),
        grid_spec=pltpu.PrefetchScalarGridSpec(
            num_scalar_prefetch=0,
            grid=(B, nc, kpc),
            in_specs=[
                pl.BlockSpec((1, br, _LANES), in_map),
                pl.BlockSpec((1, br, _LANES), in_map),
            ],
            out_specs=pl.BlockSpec((1, 1, _SUBLANES, _LANES), out_map),
            scratch_shapes=[
                pltpu.VMEM((_SUBLANES, _LANES), jnp.float32),  # intersection
                pltpu.VMEM((_SUBLANES, _LANES), jnp.float32),  # denominator
            ],
        ),
        compiler_params=pltpu.CompilerParams(
            dimension_semantics=("parallel", "parallel", "arbitrary"),
            vmem_limit_bytes=32 * 1024 * 1024),
        cost_estimate=pl.CostEstimate(
            flops=int(flops),
            transcendentals=int(transcendentals),
            bytes_accessed=int(bytes_accessed)),
    )(x, t)

    inter = jnp.sum(out[:, :, 0, 0], axis=1)
    denom = jnp.sum(out[:, :, 0, 1], axis=1)
    smooth = jnp.float32(smooth)
    dice = (2.0 * inter + smooth) / (denom + smooth)
    return jnp.mean(1.0 - dice)


def _dsc_plus_plus_loss_ref(inputs, targets, gamma=0.5, smooth=1e-5):
    B = inputs.shape[0]
    x = inputs.reshape(B, -1).astype(jnp.float32)
    t = targets.reshape(B, -1).astype(jnp.float32)
    mod = jnp.power(jnp.abs(x - t), gamma)
    inter = jnp.sum(mod * x * t, axis=1)
    denom = jnp.sum(mod * x, axis=1) + jnp.sum(mod * t, axis=1)
    dice = (2.0 * inter + smooth) / (denom + smooth)
    return jnp.mean(1.0 - dice)


if __name__ == "__main__":
    key = jax.random.PRNGKey(0)
    k1, k2, k3, k4, k5, k6 = jax.random.split(key, 6)

    # Main check: NCHW like PyTorch, N = C*H*W = 1024 per sample.
    B, C, H, W = 2, 4, 16, 16
    inputs = jax.nn.sigmoid(jax.random.normal(k1, (B, C, H, W), jnp.float32))
    targets = (jax.random.uniform(k2, (B, C, H, W)) > 0.5).astype(jnp.float32)
    loss = jax.block_until_ready(
        dsc_plus_plus_loss(inputs, targets, gamma=0.5, smooth=1e-5))
    ref = _dsc_plus_plus_loss_ref(inputs, targets, gamma=0.5, smooth=1e-5)
    assert jnp.allclose(loss, ref, rtol=1e-5, atol=1e-6), (loss, ref)

    # Ragged N (not a multiple of 128): exercises the 128-lane zero-pad path.
    B2, C2, H2, W2 = 2, 3, 7, 9
    inp2 = jax.nn.sigmoid(jax.random.normal(k3, (B2, C2, H2, W2), jnp.float32))
    tgt2 = (jax.random.uniform(k4, (B2, C2, H2, W2)) > 0.5).astype(jnp.float32)
    loss2 = jax.block_until_ready(dsc_plus_plus_loss(inp2, tgt2))
    ref2 = _dsc_plus_plus_loss_ref(inp2, tgt2)
    assert jnp.allclose(loss2, ref2, rtol=1e-5, atol=1e-6), (loss2, ref2)

    # B == 1 with a small block_rows: exercises the cross-core K split,
    # in-kernel tail masking, bf16 targets and the gamma=1.5 special case.
    B3, C3, H3, W3 = 1, 3, 40, 52
    inp3 = jax.nn.sigmoid(jax.random.normal(k5, (B3, C3, H3, W3), jnp.float32))
    tgt3 = (jax.random.uniform(k6, (B3, C3, H3, W3)) > 0.5).astype(jnp.float32)
    loss3 = jax.block_until_ready(
        dsc_plus_plus_loss(inp3, tgt3, gamma=1.5, block_rows=64,
                           cast_targets_bf16=True))
    ref3 = _dsc_plus_plus_loss_ref(inp3, tgt3, gamma=1.5)
    assert jnp.allclose(loss3, ref3, rtol=1e-5, atol=1e-6), (loss3, ref3)

    print("KERNEL_OK")
</pallas_src>

<mosaic_0001>
module attributes {stable_mosaic.version = 11 : i64} {
  func.func @_dscpp_kernel(%arg0: i32, %arg1: i32, %arg2: i32, %arg3: memref<1x8x128xf32, #tpu.memory_space<vmem>>, %arg4: memref<1x8x128xf32, #tpu.memory_space<vmem>>, %arg5: memref<1x1x8x128xf32, #tpu.memory_space<vmem>>, %arg6: memref<8x128xf32, #tpu.memory_space<vmem>>, %arg7: memref<8x128xf32, #tpu.memory_space<vmem>>) attributes {dimension_semantics = [#tpu.dimension_semantics<parallel>, #tpu.dimension_semantics<parallel>, #tpu.dimension_semantics<arbitrary>], iteration_bounds = array<i64: 2, 1, 1>, scalar_prefetch = 0 : i64, scratch_operands = 2 : i64, tpu.core_type = #tpu.core_type<tc>, window_params = [{transform_indices = @transform_0, window_bounds = array<i64: 1, 8, 128>}, {transform_indices = @transform_1, window_bounds = array<i64: 1, 8, 128>}, {transform_indices = @transform_2, window_bounds = array<i64: 1, 1, 8, 128>}]} {
    %c0_i32 = arith.constant 0 : i32
    %0 = arith.cmpi eq, %arg2, %c0_i32 : i32
    %1 = arith.extui %0 : i1 to i32
    %c0_i32_0 = arith.constant 0 : i32
    %2 = arith.cmpi ne, %1, %c0_i32_0 : i32
    scf.if %2 {
      %cst_17 = arith.constant 0.000000e+00 : f32
      %23 = vector.broadcast %cst_17 : f32 to vector<8x128xf32>
      %c0_18 = arith.constant 0 : index
      %c0_19 = arith.constant 0 : index
      %24 = vector.load %arg6[%c0_18, %c0_19] : memref<8x128xf32, #tpu.memory_space<vmem>>, vector<8x128xf32>
      tpu.vector_store %arg6[%c0_18, %c0_19], %23 {strides = array<i32>} : memref<8x128xf32, #tpu.memory_space<vmem>>, vector<8x128xf32>,
      %cst_20 = arith.constant 0.000000e+00 : f32
      %25 = vector.broadcast %cst_20 : f32 to vector<8x128xf32>
      %c0_21 = arith.constant 0 : index
      %c0_22 = arith.constant 0 : index
      %26 = vector.load %arg7[%c0_21, %c0_22] : memref<8x128xf32, #tpu.memory_space<vmem>>, vector<8x128xf32>
      tpu.vector_store %arg7[%c0_21, %c0_22], %25 {strides = array<i32>} : memref<8x128xf32, #tpu.memory_space<vmem>>, vector<8x128xf32>,
    } else {
    }
    %c0 = arith.constant 0 : index
    %c0_1 = arith.constant 0 : index
    %c0_2 = arith.constant 0 : index
    %3 = vector.load %arg3[%c0, %c0_1, %c0_2] : memref<1x8x128xf32, #tpu.memory_space<vmem>>, vector<1x8x128xf32>
    %c0_3 = arith.constant 0 : index
    %c0_4 = arith.constant 0 : index
    %c0_5 = arith.constant 0 : index
    %4 = vector.load %arg4[%c0_3, %c0_4, %c0_5] : memref<1x8x128xf32, #tpu.memory_space<vmem>>, vector<1x8x128xf32>
    %5 = arith.subf %3, %4 : vector<1x8x128xf32>
    %6 = math.absf %5 : vector<1x8x128xf32>
    %7 = math.sqrt %6 : vector<1x8x128xf32>
    %8 = arith.mulf %7, %3 : vector<1x8x128xf32>
    %9 = arith.mulf %8, %4 : vector<1x8x128xf32>
    %10 = arith.addf %3, %4 : vector<1x8x128xf32>
    %11 = arith.mulf %7, %10 : vector<1x8x128xf32>
    %c0_6 = arith.constant 0 : index
    %c0_7 = arith.constant 0 : index
    %12 = vector.load %arg6[%c0_6, %c0_7] : memref<8x128xf32, #tpu.memory_space<vmem>>, vector<8x128xf32>
    %cst = arith.constant dense<0.000000e+00> : vector<8x128xf32>
    %13 = vector.multi_reduction <add>, %9, %cst [0] : vector<1x8x128xf32> to vector<8x128xf32>
    %14 = arith.addf %12, %13 : vector<8x128xf32>
    %c0_8 = arith.constant 0 : index
    %c0_9 = arith.constant 0 : index
    %15 = vector.load %arg6[%c0_8, %c0_9] : memref<8x128xf32, #tpu.memory_space<vmem>>, vector<8x128xf32>
    tpu.vector_store %arg6[%c0_8, %c0_9], %14 {strides = array<i32>} : memref<8x128xf32, #tpu.memory_space<vmem>>, vector<8x128xf32>,
    %c0_10 = arith.constant 0 : index
    %c0_11 = arith.constant 0 : index
    %16 = vector.load %arg7[%c0_10, %c0_11] : memref<8x128xf32, #tpu.memory_space<vmem>>, vector<8x128xf32>
    %cst_12 = arith.constant dense<0.000000e+00> : vector<8x128xf32>
    %17 = vector.multi_reduction <add>, %11, %cst_12 [0] : vector<1x8x128xf32> to vector<8x128xf32>
    %18 = arith.addf %16, %17 : vector<8x128xf32>
    %c0_13 = arith.constant 0 : index
    %c0_14 = arith.constant 0 : index
    %19 = vector.load %arg7[%c0_13, %c0_14] : memref<8x128xf32, #tpu.memory_space<vmem>>, vector<8x128xf32>
    tpu.vector_store %arg7[%c0_13, %c0_14], %18 {strides = array<i32>} : memref<8x128xf32, #tpu.memory_space<vmem>>, vector<8x128xf32>,
    %c0_i32_15 = arith.constant 0 : i32
    %20 = arith.cmpi eq, %arg2, %c0_i32_15 : i32
    %21 = arith.extui %20 : i1 to i32
    %c0_i32_16 = arith.constant 0 : i32
    %22 = arith.cmpi ne, %21, %c0_i32_16 : i32
    scf.if %22 {
      %c0_17 = arith.constant 0 : index
      %c0_18 = arith.constant 0 : index
      %23 = vector.load %arg6[%c0_17, %c0_18] : memref<8x128xf32, #tpu.memory_space<vmem>>, vector<8x128xf32>
      %24 = vector.shape_cast %23 : vector<8x128xf32> to vector<1x8x128xf32>
      %cst_19 = arith.constant dense<0.000000e+00> : vector<1xf32>
      %25 = vector.multi_reduction <add>, %24, %cst_19 [1, 2] : vector<1x8x128xf32> to vector<1xf32>
      %26 = vector.shape_cast %25 : vector<1xf32> to vector<1x1x1xf32>
      %27 = vector.extract %26[0, 0, 0] : f32 from vector<1x1x1xf32>
      %c0_20 = arith.constant 0 : index
      %c0_21 = arith.constant 0 : index
      %28 = vector.load %arg7[%c0_20, %c0_21] : memref<8x128xf32, #tpu.memory_space<vmem>>, vector<8x128xf32>
      %29 = vector.shape_cast %28 : vector<8x128xf32> to vector<1x8x128xf32>
      %cst_22 = arith.constant dense<0.000000e+00> : vector<1xf32>
      %30 = vector.multi_reduction <add>, %29, %cst_22 [1, 2] : vector<1x8x128xf32> to vector<1xf32>
      %31 = vector.shape_cast %30 : vector<1xf32> to vector<1x1x1xf32>
      %32 = vector.extract %31[0, 0, 0] : f32 from vector<1x1x1xf32>
      %33 = tpu.iota {dimensions = array<i32: 3>} : vector<1x1x8x128xi32>
      %c0_i32_23 = arith.constant 0 : i32
      %34 = vector.broadcast %c0_i32_23 : i32 to vector<1x1x8x128xi32>
      %35 = arith.cmpi eq, %33, %34 : vector<1x1x8x128xi32>
      %c1_i32 = arith.constant 1 : i32
      %36 = vector.broadcast %c1_i32 : i32 to vector<1x1x8x128xi32>
      %37 = arith.cmpi eq, %33, %36 : vector<1x1x8x128xi32>
      %cst_24 = arith.constant 0.000000e+00 : f32
      %38 = vector.broadcast %32 : f32 to vector<1x1x8x128xf32>
      %39 = vector.broadcast %cst_24 : f32 to vector<1x1x8x128xf32>
      %40 = arith.select %37, %38, %39 : vector<1x1x8x128xi1>, vector<1x1x8x128xf32>
      %41 = vector.broadcast %27 : f32 to vector<1x1x8x128xf32>
      %42 = arith.select %35, %41, %40 : vector<1x1x8x128xi1>, vector<1x1x8x128xf32>
      %c0_25 = arith.constant 0 : index
      %c0_26 = arith.constant 0 : index
      %c0_27 = arith.constant 0 : index
      %c0_28 = arith.constant 0 : index
      %43 = vector.load %arg5[%c0_25, %c0_26, %c0_27, %c0_28] : memref<1x1x8x128xf32, #tpu.memory_space<vmem>>, vector<1x1x8x128xf32>
      tpu.vector_store %arg5[%c0_25, %c0_26, %c0_27, %c0_28], %42 {strides = array<i32>} : memref<1x1x8x128xf32, #tpu.memory_space<vmem>>, vector<1x1x8x128xf32>,
    } else {
    }
    return
  }
  func.func @transform_0(%arg0: i32, %arg1: i32, %arg2: i32) -> (i32, i32, i32) {
    %c1_i32 = arith.constant 1 : i32
    %0 = arith.muli %arg1, %c1_i32 : i32
    %1 = arith.addi %0, %arg2 : i32
    %c0_i32 = arith.constant 0 : i32
    %c0_i32_0 = arith.constant 0 : i32
    return %arg0, %1, %c0_i32 : i32, i32, i32
  }
  func.func @transform_1(%arg0: i32, %arg1: i32, %arg2: i32) -> (i32, i32, i32) {
    %c1_i32 = arith.constant 1 : i32
    %0 = arith.muli %arg1, %c1_i32 : i32
    %1 = arith.addi %0, %arg2 : i32
    %c0_i32 = arith.constant 0 : i32
    %c0_i32_0 = arith.constant 0 : i32
    return %arg0, %1, %c0_i32 : i32, i32, i32
  }
  func.func @transform_2(%arg0: i32, %arg1: i32, %arg2: i32) -> (i32, i32, i32, i32) {
    %c0_i32 = arith.constant 0 : i32
    %c0_i32_0 = arith.constant 0 : i32
    %c0_i32_1 = arith.constant 0 : i32
    return %arg0, %arg1, %c0_i32, %c0_i32_0 : i32, i32, i32, i32
  }
}

</mosaic_0001>

<llo_original>
// kernel: tpu_custom_call.1
$region0: #{tpu_custom_call.1}
  #allocation0 [shape = 'u32[]', space=smem, size = 0x4, offset = 0x4, fixed_abs, tag = 'smem constant byte address 0x4 - core index']
  #allocation1 [shape = 'u32[144,128]{1,0:T(1,128)}', space=vmem, size = 0x12000, scoped, tag = 'internal scratch']
  #allocation2 [shape = 'f32[8,128]{1,0:T(8,128)}', space=vmem, size = 0x1000, scoped, tag = 'scratch operand']
  #allocation3 [shape = 'f32[8,128]{1,0:T(8,128)}', space=vmem, size = 0x1000, scoped, tag = 'scratch operand']
  %s0 = inlined_call_operand.hbm [shape: f32[2,8,128], index: 0, kind: input, shape index: {}]
  %s1 = inlined_call_operand.hbm [shape: f32[2,8,128], index: 1, kind: input, shape index: {}]
  %s2 = inlined_call_operand.hbm [shape: f32[2,1,8,128], index: 2, kind: output, shape index: {}]
  %s3 = sld [smem:[#allocation0]]
  $region57: #{tpu_custom_call.1} parent=0
    _
  %s5 = ssub.s32 1, %s3
  %s6 = scalar_select 0, %s5, %s3
  $region1: #{tpu_custom_call.1} parent=0
    #allocation4 [shape = 'u8[8192]{0}', space=vmem, size = 0x2000, scoped, tag = 'input window, operand 0']
    #allocation5 [shape = 's32[2]{0}', space=sflag, size = 0x8, scoped, tag = 'scoped memory for tpu_custom_call.1']
    #allocation6 [shape = 's32[2]{0}', space=sflag, size = 0x8, scoped, tag = 'scoped memory for tpu_custom_call.1']
    #allocation7 [shape = 'u8[8192]{0}', space=vmem, size = 0x2000, scoped, tag = 'input window, operand 1']
    #allocation8 [shape = 's32[2]{0}', space=sflag, size = 0x8, scoped, tag = 'scoped memory for tpu_custom_call.1']
    #allocation9 [shape = 'u8[8192]{0}', space=vmem, size = 0x2000, scoped, tag = 'output window, operand 0']
    %7 = vsyncpa [#allocation5], 0
    %s8 = scalar_lea.sflag [#allocation5], 1
    %9 = vsyncpa %s8, 0
    %10 = vsyncpa [#allocation8], 0
    %s11 = scalar_lea.sflag [#allocation8], 1
    %12 = vsyncpa %s11, 0
    %13 = vsyncpa [#allocation6], 0
    %s14 = scalar_lea.sflag [#allocation6], 1
    %15 = vsyncpa %s14, 0
    loop: start=0, step=1, limit=4
    $region2: #{tpu_custom_call.1} parent=1 // loop_pre_header
      _
    $region3: #{tpu_custom_call.1} parent=1 // loop_header
      %s17 = sphi 0, %s21
      %p18 = scmp.ge.s32.totalorder %s17, 4
      %s24 = sphi 0, %s43
      %s25 = sphi 0, %s39
      %s26 = sphi 0, %s35
      %s27 = sphi 0, %s24
      %s28 = sphi 0, %s25
      %s29 = sphi 0, %s26
      %s30 = sphi 0, %s27
      %s31 = sphi 0, %s28
      %s32 = sphi 0, %s29
      %s50 = sphi 0, %s52
      %s53 = sphi 0, %s50
      %s54 = sphi 0, %s53
      %s70 = sphi 0, %s54
      %s80 = sphi 0, %s82
      %s83 = sphi 0, %s80
      %s84 = sphi 0, %s83
      %s100 = sphi 0, %s84
      %s108 = sphi 0, %s110
      %s111 = sphi 0, %s108
      %s112 = sphi 0, %s111
      %s128 = sphi 0, %s112
    $region4: #{tpu_custom_call.1} parent=1 // loop_header_branch
      %20 = sbr.rel (%p18) target = $region8
    $region5: #{tpu_custom_call.1} parent=1 // loop_body
      %s22 = ssub.s32 %s17, 1
      %s23 = ssub.s32 %s17, 2
      %s33 = sadd.s32 1, %s26
      %p34 = scmp.ge.s32.totalorder %s33, 1
      %s35 = scalar_select %p34, 0, %s33
      %s36 = sadd.s32 1, %s25
      %s37 = scalar_select %p34, %s36, %s25
      %p38 = scmp.ge.s32.totalorder %s37, 1
      %s39 = scalar_select %p38, 0, %s37
      %s40 = sadd.s32 1, %s24
      %s41 = scalar_select %p38, %s40, %s24
      %p42 = scmp.ge.s32.totalorder %s41, 2
      %s43 = scalar_select %p42, 0, %s41
      %s44 = sadd.s32 %s25, %s26
      %s45 = sadd.s32 %s39, %s35
      %s46 = ssub.s32 %s24, %s43
      %s47 = ssub.s32 %s44, %s45
      %s48 = sor.u32 %s46, %s47
      %p49 = scmp.eq.s32.totalorder %s48, 0
      %s51 = sadd.s32 %s50, 1
      %s52 = scalar_select %p49, %s50, %s51
      %p55 = pneg %p49
      %p56 = scmp.eq.s32.totalorder %s17, 1
      %p57 = por %p55, %p56
      %p58 = scmp.ne.s32.totalorder %s50, %s53
      %p59 = scmp.eq.s32.totalorder %s17, 0
      %p60 = por %p58, %p59
      %p61 = scmp.ne.s32.totalorder %s50, %s53
      %p62 = scmp.eq.s32.totalorder %s22, 1
      %p63 = por %p61, %p62
      %p64 = scmp.ne.s32.totalorder %s53, %s54
      %p65 = scmp.eq.s32.totalorder %s22, 0
      %p66 = por %p64, %p65
      %p67 = scmp.ne.s32.totalorder %s53, %s54
      %p68 = scmp.eq.s32.totalorder %s23, 1
      %p69 = por %p67, %p68
      %p71 = scmp.ne.s32.totalorder %s54, %s70
      %p72 = scmp.eq.s32.totalorder %s23, 0
      %p73 = por %p71, %p72
      %s74 = sadd.s32 %s25, %s26
      %s75 = sadd.s32 %s39, %s35
      %s76 = ssub.s32 %s24, %s43
      %s77 = ssub.s32 %s74, %s75
      %s78 = sor.u32 %s76, %s77
      %p79 = scmp.eq.s32.totalorder %s78, 0
      %s81 = sadd.s32 %s80, 1
      %s82 = scalar_select %p79, %s80, %s81
      %p85 = pneg %p79
      %p86 = scmp.eq.s32.totalorder %s17, 1
      %p87 = por %p85, %p86
      %p88 = scmp.ne.s32.totalorder %s80, %s83
      %p89 = scmp.eq.s32.totalorder %s17, 0
      %p90 = por %p88, %p89
      %p91 = scmp.ne.s32.totalorder %s80, %s83
      %p92 = scmp.eq.s32.totalorder %s22, 1
      %p93 = por %p91, %p92
      %p94 = scmp.ne.s32.totalorder %s83, %s84
      %p95 = scmp.eq.s32.totalorder %s22, 0
      %p96 = por %p94, %p95
      %p97 = scmp.ne.s32.totalorder %s83, %s84
      %p98 = scmp.eq.s32.totalorder %s23, 1
      %p99 = por %p97, %p98
      %p101 = scmp.ne.s32.totalorder %s84, %s100
      %p102 = scmp.eq.s32.totalorder %s23, 0
      %p103 = por %p101, %p102
      %s104 = ssub.s32 %s24, %s43
      %s105 = ssub.s32 %s25, %s39
      %s106 = sor.u32 %s104, %s105
      %p107 = scmp.eq.s32.totalorder %s106, 0
      %s109 = sadd.s32 %s108, 1
      %s110 = scalar_select %p107, %s108, %s109
      %p113 = pneg %p107
      %p114 = scmp.eq.s32.totalorder %s17, 1
      %p115 = por %p113, %p114
      %p116 = scmp.ne.s32.totalorder %s108, %s111
      %p117 = scmp.eq.s32.totalorder %s17, 0
      %p118 = por %p116, %p117
      %p119 = scmp.ne.s32.totalorder %s108, %s111
      %p120 = scmp.eq.s32.totalorder %s22, 1
      %p121 = por %p119, %p120
      %p122 = scmp.ne.s32.totalorder %s111, %s112
      %p123 = scmp.eq.s32.totalorder %s22, 0
      %p124 = por %p122, %p123
      %p125 = scmp.ne.s32.totalorder %s111, %s112
      %p126 = scmp.eq.s32.totalorder %s23, 1
      %p127 = por %p125, %p126
      %p129 = scmp.ne.s32.totalorder %s112, %s128
      %p130 = scmp.eq.s32.totalorder %s23, 0
      %p131 = por %p129, %p130
      %p132 = scmp.le.s32.totalorder 1, %s17
      %p133 = scmp.lt.s32.totalorder %s17, 3
      %p134 = pnand %p132, %p133
      %p135 = pneg %p134
      // Predicated region
      $region9: #{tpu_custom_call.1} parent=5 // pred_check
        _
      $region10: #{tpu_custom_call.1} parent=5 // pred_check_branch
        %137 = sbr.rel (%p134) target = $region12
      $region11: #{tpu_custom_call.1} parent=5 // pred_region
        %s138 = ssub.s32 %s17, 1
      $region12: #{tpu_custom_call.1} parent=5 // pred_fallthru
        _
      %p139 = scmp.lt.s32.totalorder %s17, 2
      // Predicated region
      $region13: #{tpu_custom_call.1} parent=5 // pred_check
        %p140 = pneg %p139
      $region14: #{tpu_custom_call.1} parent=5 // pred_check_branch
        %142 = sbr.rel (%p140) target = $region16
      $region15: #{tpu_custom_call.1} parent=5 // pred_region
        // Predicated region
        $region17: #{tpu_custom_call.1} parent=15 // pred_check
          %p143 = pneg %p60
        $region18: #{tpu_custom_call.1} parent=15 // pred_check_branch
          %145 = sbr.rel (%p143) target = $region20
        $region19: #{tpu_custom_call.1} parent=15 // pred_region
          %s146 = sand.u32 %s50, 1
          %s147 = scalar_lea.sflag [#allocation5], %s146
          %s148 = sand.u32 %s50, 1
          %s149 = smul.addr %s148, 8
          %s150 = scalar_lea.vmem [#allocation4], %s149
          %s151 = sadd.s32 %s25, %s26
          %s153 = ssub.s32 128, 128
          %154 = vsyncadd %s147, %s153
          %s155 = sadd.s32 %s151, %s24
          %s156 = smul.addr %s155, 128
          %s157 = scalar_lea.hbm %s0, %s156
          %s159 = sshll.u32 %s150, 4
          %s160 = int_to_ptr.vmem [resolvable:$true] %s159
          %162 = dma.hbm_to_vmem [thread:$0]  %s157, 128, %s160, %s147
        $region20: #{tpu_custom_call.1} parent=15 // pred_fallthru
          _
        // Predicated region
        $region21: #{tpu_custom_call.1} parent=15 // pred_check
          %p163 = pneg %p90
        $region22: #{tpu_custom_call.1} parent=15 // pred_check_branch
          %165 = sbr.rel (%p163) target = $region24
        $region23: #{tpu_custom_call.1} parent=15 // pred_region
          %s166 = sand.u32 %s80, 1
          %s167 = scalar_lea.sflag [#allocation8], %s166
          %s168 = sand.u32 %s80, 1
          %s169 = smul.addr %s168, 8
          %s170 = scalar_lea.vmem [#allocation7], %s169
          %s171 = sadd.s32 %s25, %s26
          %s173 = ssub.s32 128, 128
          %174 = vsyncadd %s167, %s173
          %s175 = sadd.s32 %s171, %s24
          %s176 = smul.addr %s175, 128
          %s177 = scalar_lea.hbm %s1, %s176
          %s179 = sshll.u32 %s170, 4
          %s180 = int_to_ptr.vmem [resolvable:$true] %s179
          %182 = dma.hbm_to_vmem [thread:$0]  %s177, 128, %s180, %s167
        $region24: #{tpu_custom_call.1} parent=15 // pred_fallthru
          _
      $region16: #{tpu_custom_call.1} parent=5 // pred_fallthru
        _
      %p183 = scmp.le.s32.totalorder 1, %s17
      %p184 = scmp.lt.s32.totalorder %s17, 3
      %p185 = pnand %p183, %p184
      %p186 = pneg %p185
      // Predicated region
      $region25: #{tpu_custom_call.1} parent=5 // pred_check
        _
      $region26: #{tpu_custom_call.1} parent=5 // pred_check_branch
        %188 = sbr.rel (%p185) target = $region28
      $region27: #{tpu_custom_call.1} parent=5 // pred_region
        %s189 = ssub.s32 %s17, 1
        %s190 = sand.u32 %s53, 1
        %s191 = scalar_lea.sflag [#allocation5], %s190
        %s192 = sand.u32 %s53, 1
        %s193 = smul.addr %s192, 8
        %s194 = scalar_lea.vmem [#allocation4], %s193
        // Predicated region
        $region29: #{tpu_custom_call.1} parent=27 // pred_check
          %p195 = pneg %p66
        $region30: #{tpu_custom_call.1} parent=27 // pred_check_branch
          %197 = sbr.rel (%p195) target = $region32
        $region31: #{tpu_custom_call.1} parent=27 // pred_region
          %198 = dma.done %s191, 128
        $region32: #{tpu_custom_call.1} parent=27 // pred_fallthru
          _
        %s199 = sand.u32 %s83, 1
        %s200 = scalar_lea.sflag [#allocation8], %s199
        %s201 = sand.u32 %s83, 1
        %s202 = smul.addr %s201, 8
        %s203 = scalar_lea.vmem [#allocation7], %s202
        // Predicated region
        $region33: #{tpu_custom_call.1} parent=27 // pred_check
          %p204 = pneg %p96
        $region34: #{tpu_custom_call.1} parent=27 // pred_check_branch
          %206 = sbr.rel (%p204) target = $region36
        $region35: #{tpu_custom_call.1} parent=27 // pred_region
          %207 = dma.done %s200, 128
        $region36: #{tpu_custom_call.1} parent=27 // pred_fallthru
          _
        %s208 = sand.u32 %s53, 1
        %s209 = scalar_lea.sflag [#allocation5], %s208
        %s210 = sand.u32 %s53, 1
        %s211 = smul.addr %s210, 8
        %s212 = scalar_lea.vmem [#allocation4], %s211
        %p213 = pneg %p66
        %p214 = pneg %p63
        %s215 = sand.u32 %s83, 1
        %s216 = scalar_lea.sflag [#allocation8], %s215
        %s217 = sand.u32 %s83, 1
        %s218 = smul.addr %s217, 8
        %s219 = scalar_lea.vmem [#allocation7], %s218
        %p220 = pneg %p96
        %p221 = pneg %p93
        %p222 = pneg %p124
        %p223 = pneg %p121
        %s224 = sand.u32 %s111, 1
        %s225 = scalar_lea.sflag [#allocation6], %s224
        %s226 = sand.u32 %s111, 1
        %s227 = smul.addr %s226, 8
        %s228 = scalar_lea.vmem [#allocation9], %s227
        %s229 = sadd.s32 %s28, %s29
        %s230 = sadd.s32 %s28, %s29
        %p231 = scmp.eq.s32.totalorder %s29, 0
        // Predicated region
        $region37: #{tpu_custom_call.1} parent=27 // pred_check
          %p232 = pneg %p231
        $region38: #{tpu_custom_call.1} parent=27 // pred_check_branch
          %234 = sbr.rel (%p232) target = $region40
        $region39: #{tpu_custom_call.1} parent=27 // pred_region
          %235 = vst [vmem:[#allocation2] sm:$0xff] 0.0
          %236 = vst [vmem:[#allocation3] sm:$0xff] 0.0
        $region40: #{tpu_custom_call.1} parent=27 // pred_fallthru
          _
        %v237 = vld [vmem:[%s194] sm:$0xff]
        %v238 = vld [vmem:[%s203] sm:$0xff]
        %v239 = vsub.f32 %v237, %v238
        %v240 = vand.u32 2147483647, %v239
        %v241 = vrsqrt.pop %v240
        %v242 = vmul.f32 %v240, %v241
        %vm243 = vcmp.eq.f32.partialorder %v240, inf
        %v244 = vsel %vm243, %v240, %v242
        %vm245 = vcmp.eq.f32.partialorder %v240, 0.0
        %v246 = vand.u32 %v240, 2147483648
        %v247 = vsel %vm245, %v246, %v244
        %v248 = vmul.f32 %v247, %v237
        %v249 = vmul.f32 %v248, %v238
        %v250 = vadd.f32 %v237, %v238
        %v251 = vmul.f32 %v247, %v250
        %v252 = vld [vmem:[#allocation2] sm:$0xff]
        %v253 = vadd.f32 %v249, 0.0
        %v254 = vadd.f32 %v252, %v253
        %255 = vst [vmem:[#allocation2] sm:$0xff] %v254
        %v256 = vld [vmem:[#allocation3] sm:$0xff]
        %v257 = vadd.f32 %v251, 0.0
        %v258 = vadd.f32 %v256, %v257
        %259 = vst [vmem:[#allocation3] sm:$0xff] %v258
        // Predicated region
        $region41: #{tpu_custom_call.1} parent=27 // pred_check
          %p260 = pneg %p231
        $region42: #{tpu_custom_call.1} parent=27 // pred_check_branch
          %262 = sbr.rel (%p260) target = $region44
        $region43: #{tpu_custom_call.1} parent=27 // pred_region
          %v263 = vld [vmem:[#allocation2] sm:$0xff]
          %264 = vadd.xlane.f32.xlu0 %v263
          %v265 = vpop.xlane.xlu0 %264
          %v266 = vrot.slane %v265, 4
          %v267 = vadd.f32 %v265, %v266
          %v268 = vrot.slane %v267, 2
          %v269 = vadd.f32 %v267, %v268
          %v270 = vrot.slane %v269, 1
          %v271 = vadd.f32 %v269, %v270
          %s272 = vtos %v271
          %v273 = vld [vmem:[#allocation3] sm:$0xff]
          %274 = vadd.xlane.f32.xlu0 %v273
          %v275 = vpop.xlane.xlu0 %274
          %v276 = vrot.slane %v275, 4
          %v277 = vadd.f32 %v275, %v276
          %v278 = vrot.slane %v277, 2
          %v279 = vadd.f32 %v277, %v278
          %v280 = vrot.slane %v279, 1
          %v281 = vadd.f32 %v279, %v280
          %s282 = vtos %v281
          %v283 = vlaneseq
          %v284 = vand.u32 %v283, 127
          %vm285 = vcmp.eq.s32.totalorder %v284, 0
          %vm286 = vcmp.eq.s32.totalorder %v284, 1
          %v287 = vstv %s282
          %v288 = vsel %vm286, %v287, 0.0
          %v289 = vstv %s272
          %v290 = vsel %vm285, %v289, %v288
          %291 = vst [vmem:[%s228] sm:$0xff] %v290
        $region44: #{tpu_custom_call.1} parent=27 // pred_fallthru
          _
        %s292 = sand.u32 %s111, 1
        %s293 = scalar_lea.sflag [#allocation6], %s292
        %s294 = sand.u32 %s111, 1
        %s295 = smul.addr %s294, 8
        %s296 = scalar_lea.vmem [#allocation9], %s295
        // Predicated region
        $region45: #{tpu_custom_call.1} parent=27 // pred_check
          %p297 = pneg %p121
        $region46: #{tpu_custom_call.1} parent=27 // pred_check_branch
          %299 = sbr.rel (%p297) target = $region48
        $region47: #{tpu_custom_call.1} parent=27 // pred_region
          %s301 = ssub.s32 128, 128
          %302 = vsyncadd %s293, %s301
          %s303 = sadd.s32 %s28, %s27
          %s304 = smul.addr %s303, 128
          %s305 = scalar_lea.hbm %s2, %s304
          %s307 = sshll.u32 %s296, 4
          %s308 = int_to_ptr.vmem [resolvable:$true] %s307
          %310 = dma.vmem_to_hbm [thread:$0]  %s308, 128, %s305, %s293
        $region48: #{tpu_custom_call.1} parent=27 // pred_fallthru
          _
      $region28: #{tpu_custom_call.1} parent=5 // pred_fallthru
        _
      %p311 = scmp.le.s32.totalorder 2, %s17
      // Predicated region
      $region49: #{tpu_custom_call.1} parent=5 // pred_check
        %p312 = pneg %p311
      $region50: #{tpu_custom_call.1} parent=5 // pred_check_branch
        %314 = sbr.rel (%p312) target = $region52
      $region51: #{tpu_custom_call.1} parent=5 // pred_region
        %s315 = ssub.s32 %s17, 2
        // Predicated region
        $region53: #{tpu_custom_call.1} parent=51 // pred_check
          %p316 = pneg %p127
        $region54: #{tpu_custom_call.1} parent=51 // pred_check_branch
          %318 = sbr.rel (%p316) target = $region56
        $region55: #{tpu_custom_call.1} parent=51 // pred_region
          %s319 = sand.u32 %s112, 1
          %s320 = scalar_lea.sflag [#allocation6], %s319
          %s321 = sand.u32 %s112, 1
          %s322 = smul.addr %s321, 8
          %s323 = scalar_lea.vmem [#allocation9], %s322
          %324 = dma.done %s320, 128
        $region56: #{tpu_custom_call.1} parent=51 // pred_fallthru
          _
      $region52: #{tpu_custom_call.1} parent=5 // pred_fallthru
        _
    $region6: #{tpu_custom_call.1} parent=1 // loop_footer
      %s21 = sadd.s32 1, %s17
    $region7: #{tpu_custom_call.1} parent=1 // loop_footer_branch
      %16 = sbr.rel target = $region3
    $region8: #{tpu_custom_call.1} parent=1 // loop_exit
      _
    %325 = vsyncpa [#allocation5], 1
    %s326 = scalar_lea.sflag [#allocation5], 1
    %327 = vsyncpa %s326, 1
    %328 = vsyncpa [#allocation8], 1
    %s329 = scalar_lea.sflag [#allocation8], 1
    %330 = vsyncpa %s329, 1
    %331 = vsyncpa [#allocation6], 1
    %s332 = scalar_lea.sflag [#allocation6], 1
    %333 = vsyncpa %s332, 1

</llo_original>
